<compile_context>
chip_gen: v7x
topology: tpu7x:2x2x1
jax: 0.10.0
libtpu: 0.0.40
codegen_flags: <defaults>
</compile_context>

<pallas_src>
import numpy as np
import jax
import jax.numpy as jnp
from jax.experimental import pallas as pl
from jax.experimental.pallas import tpu as pltpu


def _round_up(x, m):
    return ((x + m - 1) // m) * m


def _detect_n_parallel():
    """2 grid slices (megacore sharding) only on dual-TensorCore chips (v7x)."""
    try:
        kind = jax.devices()[0].device_kind.lower()
    except Exception:
        return 1
    return 2 if ("v7" in kind or "tpu7" in kind) else 1


def _select_tile(t_total, k_pad, n_parallel, data_itemsize,
                 vmem_buffer_budget_bytes, max_tile_lanes):
    """Largest lane tile (multiple of 128) whose double-buffered blocks fit the budget."""
    per_lane_bytes = (2 * k_pad * data_itemsize   # double-buffered bf16 data block
                      + 2 * 2 * 4                 # double-buffered (2, tile) f32 aux
                      + 4)                        # (1, tile) f32 accumulator scratch
    tile_budget = max(128, (vmem_buffer_budget_bytes // per_lane_bytes) // 128 * 128)
    t_needed = _round_up(pl.cdiv(t_total, n_parallel), 128)
    tile = max(128, min(tile_budget, max_tile_lanes, t_needed))
    assert tile % 128 == 0, "time tile must be a multiple of 128"
    return tile


# ---------------------------------------------------------------------------
# Fused kernel: one (1,K) @ (K,tile) bf16 matmul per time chunk, weighted
# Poisson NLL accumulated lane-wise into scratch; cross-lane reduce + store
# deferred to the last chunk of the current parallel slice.
# ---------------------------------------------------------------------------
def _joint_loss_kernel(w_ref, data_ref, aux_ref, out_ref, acc_ref):
    c = pl.program_id(1)

    @pl.when(c == 0)
    def _init():
        acc_ref[...] = jnp.zeros_like(acc_ref)

    gen = jnp.dot(w_ref[...], data_ref[...],
                  preferred_element_type=jnp.float32)            # (1, tile) f32
    aux = aux_ref[...]                                           # (2, tile) f32
    spk = aux[0:1, :]                                            # pre-shifted spikes
    wt = aux[1:2, :]                                             # per-bin loss weights
    acc_ref[...] += wt * (jnp.exp(gen) - spk * gen)              # weighted Poisson NLL

    @pl.when(c == pl.num_programs(1) - 1)
    def _finalize():
        out_ref[...] = jnp.reshape(jnp.sum(acc_ref[...]), (1, 1, 1))


def _joint_loss_pallas(w_row, data_p, aux_p, *, k_pad, tile, n_parallel,
                       chunks_per_core, t_pad):
    def col_map(p, c):
        return (0, p * chunks_per_core + c)

    grid_spec = pltpu.PrefetchScalarGridSpec(
        num_scalar_prefetch=0,
        grid=(n_parallel, chunks_per_core),
        in_specs=[
            pl.BlockSpec((1, k_pad), lambda p, c: (0, 0)),    # fused weight row (bf16)
            pl.BlockSpec((k_pad, tile), col_map),             # fused design matrix (bf16)
            pl.BlockSpec((2, tile), col_map),                 # [shifted spikes; weights] (f32)
        ],
        out_specs=pl.BlockSpec((1, 1, 1), lambda p, c: (p, 0, 0)),
        scratch_shapes=[pltpu.VMEM((1, tile), jnp.float32)],
    )

    itemsize = np.dtype(data_p.dtype).itemsize
    cost = pl.CostEstimate(
        flops=2 * k_pad * t_pad + 5 * t_pad,
        transcendentals=t_pad,
        bytes_accessed=k_pad * t_pad * itemsize + 2 * t_pad * 4
                       + k_pad * itemsize + n_parallel * 4,
    )

    partial = pl.pallas_call(
        _joint_loss_kernel,
        out_shape=jax.ShapeDtypeStruct((n_parallel, 1, 1), jnp.float32),
        grid_spec=grid_spec,
        compiler_params=pltpu.CompilerParams(
            dimension_semantics=("parallel", "arbitrary"),
            vmem_limit_bytes=32 * 1024 * 1024),
        cost_estimate=cost,
    )(w_row, data_p, aux_p)
    return jnp.sum(partial)


# ---------------------------------------------------------------------------
# Module wrapper.  Packing (concat / transpose / pad / bf16 cast) lives in
# pack_data() so it can be hoisted out of an optimizer loop; the pallas_call
# plus the tiny weight-row build is the per-step work.
# ---------------------------------------------------------------------------
class JointFlashedMultimovieTimecourseGLMPallas:
    def __init__(self, n_basis_stim_time, n_basis_feedback, n_basis_coupling,
                 n_coupled_cells, group_sparse_reg_lambda=0.0, flashed_weight=1.0,
                 seed=0, data_dtype=jnp.bfloat16, n_parallel=None,
                 vmem_buffer_budget_bytes=16 * 1024 * 1024, max_tile_lanes=8192):
        self.n_basis_stim_time = n_basis_stim_time
        self.n_basis_feedback = n_basis_feedback
        self.n_basis_coupling = n_basis_coupling
        self.n_coupled_cells = n_coupled_cells
        self.group_sparse_reg_lambda = float(group_sparse_reg_lambda)
        self.flashed_weight = float(flashed_weight)
        self.data_dtype = data_dtype
        self.n_parallel = n_parallel
        self.vmem_buffer_budget_bytes = int(vmem_buffer_budget_bytes)
        self.max_tile_lanes = int(max_tile_lanes)

        # Deterministic uniform(-0.01, 0.01) init, matching the PyTorch __init__.
        ks = jax.random.split(jax.random.PRNGKey(seed), 5)
        u = lambda k, shp: jax.random.uniform(k, shp, jnp.float32, -0.01, 0.01)
        self.coupling_w = u(ks[0], (n_coupled_cells, n_basis_coupling))
        self.feedback_w = u(ks[1], (1, n_basis_feedback))
        self.stim_time_w = u(ks[2], (1, n_basis_stim_time))
        self.bias = u(ks[3], (1,))
        self.coupling_filter_norm = u(ks[4], (n_coupled_cells,))   # coupling_aux
        # TODO(synk): loss_callable is fixed to the Poisson NLL and the
        # use_multimovie_weights branch (never enabled in the reference forward)
        # uses equal per-movie weighting.

    # ---- data packing (run once per dataset, outside the fit loop) ---------
    def pack_data(self, filt_multimovie, cell_spike_multibin,
                  filt_feedback_multibins, filt_coupling_multibins,
                  flashed_spat_filt, flashed_time_basis_filt,
                  flashed_binned_spikes_cell, flashed_filtered_feedback,
                  flashed_filtered_coupling):
        f32 = jnp.float32
        n_k = self.n_coupled_cells * self.n_basis_coupling
        k_ext = self.n_basis_stim_time + self.n_basis_feedback + n_k + 1

        data_segs, spk_segs, wt_segs = [], [], []

        # --- movie segments --------------------------------------------------
        n_movies = len(filt_multimovie)
        for fm, spk, ffb, fcp in zip(filt_multimovie, cell_spike_multibin,
                                     filt_feedback_multibins, filt_coupling_multibins):
            t_m = fm.shape[-1]
            data_segs.append(jnp.concatenate(
                [fm, ffb, fcp.reshape(n_k, t_m), jnp.ones((1, t_m), f32)], axis=0))
            # gen[t] pairs with spikes[t+1]; last bin is dropped via weight=0.
            spk_segs.append(jnp.concatenate([spk[1:], jnp.zeros((1,), f32)]))
            wt_segs.append(
                jnp.full((t_m,), 1.0 / (n_movies * (t_m - 1)), f32).at[-1].set(0.0))

        # --- flashed segment (all trials flattened onto the lane axis) -------
        n_tr, t_f = flashed_binned_spikes_cell.shape
        stim_rows = flashed_spat_filt[:, None, None] * flashed_time_basis_filt[None]
        fl_data = jnp.concatenate(
            [stim_rows, flashed_filtered_feedback,
             flashed_filtered_coupling.reshape(n_tr, n_k, t_f),
             jnp.ones((n_tr, 1, t_f), f32)], axis=1)               # (N, K_ext, T_f)
        data_segs.append(jnp.transpose(fl_data, (1, 0, 2)).reshape(k_ext, n_tr * t_f))
        spk_segs.append(jnp.concatenate(
            [flashed_binned_spikes_cell[:, 1:], jnp.zeros((n_tr, 1), f32)],
            axis=1).reshape(-1))
        wt_segs.append(
            jnp.full((n_tr, t_f), self.flashed_weight / (n_tr * (t_f - 1)), f32)
            .at[:, -1].set(0.0).reshape(-1))

        data = jnp.concatenate(data_segs, axis=1)       # (K_ext, T_total) f32
        spk = jnp.concatenate(spk_segs)                 # (T_total,)
        wt = jnp.concatenate(wt_segs)                   # (T_total,)
        t_total = data.shape[1]

        n_parallel = self.n_parallel if self.n_parallel is not None else _detect_n_parallel()
        k_pad = _round_up(k_ext, 8)
        itemsize = np.dtype(self.data_dtype).itemsize
        tile = _select_tile(t_total, k_pad, n_parallel, itemsize,
                            self.vmem_buffer_budget_bytes, self.max_tile_lanes)
        t_pad = _round_up(t_total, tile * n_parallel)
        chunks_per_core = t_pad // (tile * n_parallel)

        data_p = jnp.pad(data, ((0, k_pad - k_ext),
                                (0, t_pad - t_total))).astype(self.data_dtype)
        aux_p = jnp.stack([jnp.pad(spk, (0, t_pad - t_total)),
                           jnp.pad(wt, (0, t_pad - t_total))], axis=0)   # (2, T_pad) f32

        cfg = dict(k_ext=k_ext, k_pad=k_pad, tile=tile, t_pad=t_pad,
                   n_parallel=n_parallel, chunks_per_core=chunks_per_core)
        return data_p, aux_p, cfg

    # ---- per-step work (jit this) ------------------------------------------
    def _fused_weight_row(self, k_pad, k_ext):
        n_k = self.n_coupled_cells * self.n_basis_coupling
        w = jnp.concatenate(
            [self.stim_time_w, self.feedback_w,
             self.coupling_w.reshape(1, n_k), self.bias.reshape(1, 1)], axis=1)
        w = jnp.pad(w, ((0, 0), (0, k_pad - k_ext)))
        return w.astype(self.data_dtype)

    def loss_from_packed(self, data_p, aux_p, cfg):
        w_row = self._fused_weight_row(cfg["k_pad"], cfg["k_ext"])
        total = _joint_loss_pallas(
            w_row, data_p, aux_p,
            k_pad=cfg["k_pad"], tile=cfg["tile"], n_parallel=cfg["n_parallel"],
            chunks_per_core=cfg["chunks_per_core"], t_pad=cfg["t_pad"])
        if self.group_sparse_reg_lambda != 0.0:
            total = total + self.group_sparse_reg_lambda * jnp.sum(self.coupling_filter_norm)
        return total

    def forward(self, *data_args):
        # One-shot convenience path; in a fit loop, call pack_data once and
        # jit loss_from_packed on the packed buffers instead.
        data_p, aux_p, cfg = self.pack_data(*data_args)
        return self.loss_from_packed(data_p, aux_p, cfg)


# ---------------------------------------------------------------------------
# Pure-JAX reference (mirrors the PyTorch forward semantics exactly, f32).
# ---------------------------------------------------------------------------
def _poisson_loss(gen, spk):
    return jnp.mean(jnp.exp(gen) - spk * gen)


def reference_forward(model, filt_multimovie, cell_spike_multibin,
                      filt_feedback_multibins, filt_coupling_multibins,
                      flashed_spat_filt, flashed_time_basis_filt,
                      flashed_binned_spikes_cell, flashed_filtered_feedback,
                      flashed_filtered_coupling):
    movie_losses = []
    for fm, spk, ffb, fcp in zip(filt_multimovie, cell_spike_multibin,
                                 filt_feedback_multibins, filt_coupling_multibins):
        stim = (model.stim_time_w @ fm)[0]
        fb = (model.feedback_w @ ffb)[0]
        cp = jnp.einsum('cb,cbt->t', model.coupling_w, fcp)
        gen = model.bias[0] + stim + fb + cp
        movie_losses.append(_poisson_loss(gen[:-1], spk[1:]))
    movie_loss = jnp.mean(jnp.stack(movie_losses))

    time_filt = model.stim_time_w @ flashed_time_basis_filt          # (1, T)
    stim = flashed_spat_filt[:, None] * time_filt                    # (N, T)
    fb = jnp.einsum('ab,nbt->nt', model.feedback_w, flashed_filtered_feedback)
    cp = jnp.einsum('cb,ncbt->nt', model.coupling_w, flashed_filtered_coupling)
    gen = model.bias[0] + stim + fb + cp
    flashed_loss = _poisson_loss(gen[:, :-1], flashed_binned_spikes_cell[:, 1:])

    total = movie_loss + flashed_loss * model.flashed_weight
    if model.group_sparse_reg_lambda != 0.0:
        total = total + model.group_sparse_reg_lambda * jnp.sum(model.coupling_filter_norm)
    return total


# ---------------------------------------------------------------------------
if __name__ == "__main__":
    n_basis_stim_time = 10
    n_basis_feedback = 8
    n_basis_coupling = 6
    n_coupled_cells = 5

    movie_bins = [160, 224, 192]          # different lengths per movie
    n_flashed_trials = 4
    n_flashed_bins = 120

    model = JointFlashedMultimovieTimecourseGLMPallas(
        n_basis_stim_time, n_basis_feedback, n_basis_coupling, n_coupled_cells,
        group_sparse_reg_lambda=0.01, flashed_weight=0.75, seed=0)

    key = jax.random.PRNGKey(0)
    keys = iter(jax.random.split(key, 32))
    f32 = jnp.float32

    filt_multimovie, cell_spike_multibin = [], []
    filt_feedback_multibins, filt_coupling_multibins = [], []
    for t in movie_bins:
        filt_multimovie.append(
            0.5 * jax.random.normal(next(keys), (n_basis_stim_time, t), f32))
        cell_spike_multibin.append(
            jax.random.poisson(next(keys), 0.5, (t,)).astype(f32))
        filt_feedback_multibins.append(
            0.5 * jax.random.normal(next(keys), (n_basis_feedback, t), f32))
        filt_coupling_multibins.append(
            0.5 * jax.random.normal(next(keys),
                                    (n_coupled_cells, n_basis_coupling, t), f32))

    flashed_spat_filt = jax.random.normal(next(keys), (n_flashed_trials,), f32)
    flashed_time_basis_filt = 0.5 * jax.random.normal(
        next(keys), (n_basis_stim_time, n_flashed_bins), f32)
    flashed_binned_spikes_cell = jax.random.poisson(
        next(keys), 0.5, (n_flashed_trials, n_flashed_bins)).astype(f32)
    flashed_filtered_feedback = 0.5 * jax.random.normal(
        next(keys), (n_flashed_trials, n_basis_feedback, n_flashed_bins), f32)
    flashed_filtered_coupling = 0.5 * jax.random.normal(
        next(keys),
        (n_flashed_trials, n_coupled_cells, n_basis_coupling, n_flashed_bins), f32)

    data_args = (filt_multimovie, cell_spike_multibin, filt_feedback_multibins,
                 filt_coupling_multibins, flashed_spat_filt, flashed_time_basis_filt,
                 flashed_binned_spikes_cell, flashed_filtered_feedback,
                 flashed_filtered_coupling)

    # Pack once (would be hoisted out of a fit loop); jit only the per-step work.
    data_p, aux_p, cfg = model.pack_data(*data_args)
    loss_fn = jax.jit(lambda d, a: model.loss_from_packed(d, a, cfg))
    loss = jax.block_until_ready(loss_fn(data_p, aux_p))

    ref = jax.block_until_ready(reference_forward(model, *data_args))
    # Tolerance loosened slightly for the bf16 design-matrix stream (f32 accumulation).
    assert np.isclose(float(loss), float(ref), rtol=2e-3, atol=2e-3), \
        f"pallas={float(loss)} ref={float(ref)}"

    print("KERNEL_OK")
</pallas_src>

<mosaic_0001>
module attributes {stable_mosaic.version = 11 : i64} {
  func.func @_joint_loss_kernel(%arg0: i32, %arg1: i32, %arg2: memref<1x56xbf16, #tpu.memory_space<vmem>>, %arg3: memref<56x1152xbf16, #tpu.memory_space<vmem>>, %arg4: memref<2x1152xf32, #tpu.memory_space<vmem>>, %arg5: memref<1x1x1xf32, #tpu.memory_space<vmem>>, %arg6: memref<1x1152xf32, #tpu.memory_space<vmem>>) attributes {dimension_semantics = [#tpu.dimension_semantics<parallel>, #tpu.dimension_semantics<arbitrary>], iteration_bounds = array<i64: 1, 1>, scalar_prefetch = 0 : i64, scratch_operands = 1 : i64, tpu.core_type = #tpu.core_type<tc>, window_params = [{pipeline_mode = #tpu.pipeline_mode<synchronous>, transform_indices = @transform_0, window_bounds = array<i64: 1, 56>}, {transform_indices = @transform_1, window_bounds = array<i64: 56, 1152>}, {transform_indices = @transform_2, window_bounds = array<i64: 2, 1152>}, {transform_indices = @transform_3, window_bounds = array<i64: 1, 1, 1>}]} {
    %c0_i32 = arith.constant 0 : i32
    %0 = arith.cmpi eq, %arg1, %c0_i32 : i32
    %1 = arith.extui %0 : i1 to i32
    %c0_i32_0 = arith.constant 0 : i32
    %2 = arith.cmpi ne, %1, %c0_i32_0 : i32
    scf.if %2 {
      %cst_12 = arith.constant 0.000000e+00 : f32
      %19 = vector.broadcast %cst_12 : f32 to vector<1x1152xf32>
      %c0_13 = arith.constant 0 : index
      %c0_14 = arith.constant 0 : index
      %20 = vector.load %arg6[%c0_13, %c0_14] : memref<1x1152xf32, #tpu.memory_space<vmem>>, vector<1x1152xf32>
      tpu.vector_store %arg6[%c0_13, %c0_14], %19 {strides = array<i32>} : memref<1x1152xf32, #tpu.memory_space<vmem>>, vector<1x1152xf32>,
    } else {
    }
    %c0 = arith.constant 0 : index
    %c0_1 = arith.constant 0 : index
    %3 = vector.load %arg2[%c0, %c0_1] : memref<1x56xbf16, #tpu.memory_space<vmem>>, vector<1x56xbf16>
    %c0_2 = arith.constant 0 : index
    %c0_3 = arith.constant 0 : index
    %4 = vector.load %arg3[%c0_2, %c0_3] : memref<56x1152xbf16, #tpu.memory_space<vmem>>, vector<56x1152xbf16>
    %cst = arith.constant dense<0.000000e+00> : vector<1x1152xf32>
    %5 = tpu.matmul %3, %4, %cst {dimension_numbers = #tpu.dot_dimension_numbers<[1], [0], [0], [1], [0, 0, 1, 1], [], []>} : vector<1x56xbf16>, vector<56x1152xbf16>, vector<1x1152xf32> -> vector<1x1152xf32>
    %c0_4 = arith.constant 0 : index
    %c0_5 = arith.constant 0 : index
    %6 = vector.load %arg4[%c0_4, %c0_5] : memref<2x1152xf32, #tpu.memory_space<vmem>>, vector<2x1152xf32>
    %7 = vector.extract_strided_slice %6 {offsets = [0, 0], sizes = [1, 1152], strides = [1, 1]} : vector<2x1152xf32> to vector<1x1152xf32>
    %8 = vector.extract_strided_slice %6 {offsets = [1, 0], sizes = [1, 1152], strides = [1, 1]} : vector<2x1152xf32> to vector<1x1152xf32>
    %c0_6 = arith.constant 0 : index
    %c0_7 = arith.constant 0 : index
    %9 = vector.load %arg6[%c0_6, %c0_7] : memref<1x1152xf32, #tpu.memory_space<vmem>>, vector<1x1152xf32>
    %10 = math.exp %5 : vector<1x1152xf32>
    %11 = arith.mulf %7, %5 : vector<1x1152xf32>
    %12 = arith.subf %10, %11 : vector<1x1152xf32>
    %13 = arith.mulf %8, %12 : vector<1x1152xf32>
    %14 = arith.addf %9, %13 : vector<1x1152xf32>
    %c0_8 = arith.constant 0 : index
    %c0_9 = arith.constant 0 : index
    %15 = vector.load %arg6[%c0_8, %c0_9] : memref<1x1152xf32, #tpu.memory_space<vmem>>, vector<1x1152xf32>
    tpu.vector_store %arg6[%c0_8, %c0_9], %14 {strides = array<i32>} : memref<1x1152xf32, #tpu.memory_space<vmem>>, vector<1x1152xf32>,
    %c0_i32_10 = arith.constant 0 : i32
    %16 = arith.cmpi eq, %arg1, %c0_i32_10 : i32
    %17 = arith.extui %16 : i1 to i32
    %c0_i32_11 = arith.constant 0 : i32
    %18 = arith.cmpi ne, %17, %c0_i32_11 : i32
    scf.if %18 {
      %c0_12 = arith.constant 0 : index
      %c0_13 = arith.constant 0 : index
      %19 = vector.load %arg6[%c0_12, %c0_13] : memref<1x1152xf32, #tpu.memory_space<vmem>>, vector<1x1152xf32>
      %20 = vector.shape_cast %19 : vector<1x1152xf32> to vector<1x1x1152xf32>
      %cst_14 = arith.constant dense<0.000000e+00> : vector<1xf32>
      %21 = vector.multi_reduction <add>, %20, %cst_14 [1, 2] : vector<1x1x1152xf32> to vector<1xf32>
      %22 = vector.shape_cast %21 : vector<1xf32> to vector<1x1x1xf32>
      %23 = vector.extract %22[0, 0, 0] : f32 from vector<1x1x1xf32>
      %24 = vector.broadcast %23 : f32 to vector<1x1x1xf32>
      %c0_15 = arith.constant 0 : index
      %c0_16 = arith.constant 0 : index
      %c0_17 = arith.constant 0 : index
      %25 = vector.load %arg5[%c0_15, %c0_16, %c0_17] : memref<1x1x1xf32, #tpu.memory_space<vmem>>, vector<1x1x1xf32>
      tpu.vector_store %arg5[%c0_15, %c0_16, %c0_17], %24 {strides = array<i32>} : memref<1x1x1xf32, #tpu.memory_space<vmem>>, vector<1x1x1xf32>,
    } else {
    }
    return
  }
  func.func @transform_0(%arg0: i32, %arg1: i32) -> (i32, i32) {
    %c0_i32 = arith.constant 0 : i32
    %c0_i32_0 = arith.constant 0 : i32
    %c0_i32_1 = arith.constant 0 : i32
    return %c0_i32, %c0_i32_0 : i32, i32
  }
  func.func @transform_1(%arg0: i32, %arg1: i32) -> (i32, i32) {
    %c1_i32 = arith.constant 1 : i32
    %0 = arith.muli %arg0, %c1_i32 : i32
    %1 = arith.addi %0, %arg1 : i32
    %c0_i32 = arith.constant 0 : i32
    %c0_i32_0 = arith.constant 0 : i32
    return %c0_i32, %1 : i32, i32
  }
  func.func @transform_2(%arg0: i32, %arg1: i32) -> (i32, i32) {
    %c1_i32 = arith.constant 1 : i32
    %0 = arith.muli %arg0, %c1_i32 : i32
    %1 = arith.addi %0, %arg1 : i32
    %c0_i32 = arith.constant 0 : i32
    %c0_i32_0 = arith.constant 0 : i32
    return %c0_i32, %1 : i32, i32
  }
  func.func @transform_3(%arg0: i32, %arg1: i32) -> (i32, i32, i32) {
    %c0_i32 = arith.constant 0 : i32
    %c0_i32_0 = arith.constant 0 : i32
    %c0_i32_1 = arith.constant 0 : i32
    return %arg0, %c0_i32, %c0_i32_0 : i32, i32, i32
  }
}

</mosaic_0001>

<llo_original>
// kernel: _lambda_.1
$region0: #{_lambda_.1}
  #allocation0 [shape = 'u32[]', space=smem, size = 0x4, offset = 0x4, fixed_abs, tag = 'smem constant byte address 0x4 - core index']
  #allocation1 [shape = 'u32[144,128]{1,0:T(1,128)}', space=vmem, size = 0x12000, scoped, tag = 'internal scratch']
  #allocation2 [shape = 'f32[1,1152]{1,0:T(1,128)}', space=vmem, size = 0x1200, scoped, tag = 'scratch operand']
  %s0 = inlined_call_operand.vmem [shape: bf16[1,56], index: 0, kind: input, shape index: {}]
  %s1 = inlined_call_operand.hbm [shape: bf16[56,1152], index: 1, kind: input, shape index: {}]
  %s2 = inlined_call_operand.hbm [shape: f32[2,1152], index: 2, kind: input, shape index: {}]
  %s3 = inlined_call_operand.hbm [shape: f32[1,1,1], index: 3, kind: output, shape index: {}]
  %s4 = sld [smem:[#allocation0]]
  $region38: #{_lambda_.1} parent=0
    _
  %s6 = ssub.s32 1, %s4
  %s7 = scalar_select 0, %s6, %s4
  $region1: #{_lambda_.1} parent=0
    #allocation3 [shape = 'u8[129024]{0}', space=vmem, size = 0x1f800, scoped, tag = 'input window, operand 1, single buffered']
    #allocation4 [shape = 's32[1]{0}', space=sflag, size = 0x4, scoped, tag = 'scoped memory for _lambda_.1']
    #allocation5 [shape = 's32[1]{0}', space=sflag, size = 0x4, scoped, tag = 'scoped memory for _lambda_.1']
    #allocation6 [shape = 'u8[9216]{0}', space=vmem, size = 0x2400, scoped, tag = 'input window, operand 2, single buffered']
    #allocation7 [shape = 's32[1]{0}', space=sflag, size = 0x4, scoped, tag = 'scoped memory for _lambda_.1']
    #allocation8 [shape = 'u8[512]{0}', space=vmem, size = 0x400, scoped, tag = 'output window, operand 0, single buffered']
    %8 = vsyncpa [#allocation4], 0
    %9 = vsyncpa [#allocation7], 0
    %10 = vsyncpa [#allocation5], 0
    // Predicated region
    $region2: #{_lambda_.1} parent=1 // pred_check
      _
    $region3: #{_lambda_.1} parent=1 // pred_check_branch
      %12 = sbr.rel (0) target = $region5
    $region4: #{_lambda_.1} parent=1 // pred_region
      _
    $region5: #{_lambda_.1} parent=1 // pred_fallthru
      _
    // Predicated region
    $region6: #{_lambda_.1} parent=1 // pred_check
      _
    $region7: #{_lambda_.1} parent=1 // pred_check_branch
      %14 = sbr.rel (0) target = $region9
    $region8: #{_lambda_.1} parent=1 // pred_region
      %s15 = sadd.s32 0, 0
      %s16 = smul.u32 9, %s15
      %s18 = ssub.s32 4032, 4032
      %19 = vsyncadd [#allocation4], %s18
      %s20 = smul.addr %s16, 64
      %s21 = scalar_lea.hbm %s1, %s20
      %s22 = sshll.u32 [#allocation3], 4
      %s23 = int_to_ptr.vmem [resolvable:$true] %s22
      %28 = dma.hbm_to_vmem [thread:$0]  %s21, 4032, %s23, [#allocation4], 576, 576, 36
    $region9: #{_lambda_.1} parent=1 // pred_fallthru
      _
    // Predicated region
    $region10: #{_lambda_.1} parent=1 // pred_check
      _
    $region11: #{_lambda_.1} parent=1 // pred_check_branch
      %30 = sbr.rel (0) target = $region13
    $region12: #{_lambda_.1} parent=1 // pred_region
      %s31 = sadd.s32 0, 0
      %s32 = smul.u32 9, %s31
      %s34 = ssub.s32 288, 288
      %35 = vsyncadd [#allocation7], %s34
      %s36 = smul.addr %s32, 32
      %s37 = scalar_lea.hbm %s2, %s36
      %s39 = sshll.u32 [#allocation6], 4
      %s40 = int_to_ptr.vmem [resolvable:$true] %s39
      %42 = dma.hbm_to_vmem [thread:$0]  %s37, 288, %s40, [#allocation7]
    $region13: #{_lambda_.1} parent=1 // pred_fallthru
      _
    // Predicated region
    $region14: #{_lambda_.1} parent=1 // pred_check
      _
    $region15: #{_lambda_.1} parent=1 // pred_check_branch
      %44 = sbr.rel (0) target = $region17
    $region16: #{_lambda_.1} parent=1 // pred_region
      %45 = dma.done [#allocation4], 4032
    $region17: #{_lambda_.1} parent=1 // pred_fallthru
      _
    // Predicated region
    $region18: #{_lambda_.1} parent=1 // pred_check
      _
    $region19: #{_lambda_.1} parent=1 // pred_check_branch
      %47 = sbr.rel (0) target = $region21
    $region20: #{_lambda_.1} parent=1 // pred_region
      %48 = dma.done [#allocation7], 288
    $region21: #{_lambda_.1} parent=1 // pred_fallthru
      _
    %s49 = sadd.s32 0, 0
    %s50 = smul.u32 9, %s49
    %s51 = sadd.s32 0, 0
    %s52 = smul.u32 9, %s51
    %p54 = scmp.eq.s32.totalorder 0, 0
    // Predicated region
    $region22: #{_lambda_.1} parent=1 // pred_check
      %p55 = pneg %p54
    $region23: #{_lambda_.1} parent=1 // pred_check_branch
      %57 = sbr.rel (%p55) target = $region25
    $region24: #{_lambda_.1} parent=1 // pred_region
      %58 = vst [vmem:[#allocation2] sm:$0xff] 0.0
      %v59 = vlaneseq
      %vm60 = vcmp.ge.s32.totalorder %v59, 0
      %vm61 = vcmp.lt.s32.totalorder %v59, 128
      %vm62 = vmand %vm60, %vm61
      %63 = vst.msk [vmem:[#allocation2 + $0x8] sm:$0x1] %vm62, 0.0
    $region25: #{_lambda_.1} parent=1 // pred_fallthru
      _
    %v64 = vld [vmem:[%s0] sm:$0x1]
    %v65 = vld [vmem:[#allocation3] sm:$0xff]
    %v66 = vld [vmem:[#allocation3 + $0x8] sm:$0xff]
    %v67 = vld [vmem:[#allocation3 + $0x10] sm:$0xff]
    %v68 = vld [vmem:[#allocation3 + $0x18] sm:$0xff]
    %v69 = vld [vmem:[#allocation3 + $0x20] sm:$0xf]
    %v70 = vld [vmem:[#allocation3 + $0x24] sm:$0xff]
    %v71 = vld [vmem:[#allocation3 + $0x2c] sm:$0xff]
    %v72 = vld [vmem:[#allocation3 + $0x34] sm:$0xff]
    %v73 = vld [vmem:[#allocation3 + $0x3c] sm:$0xff]
    %v74 = vld [vmem:[#allocation3 + $0x44] sm:$0xf]
    %v75 = vld [vmem:[#allocation3 + $0x48] sm:$0xff]
    %v76 = vld [vmem:[#allocation3 + $0x50] sm:$0xff]
    %v77 = vld [vmem:[#allocation3 + $0x58] sm:$0xff]
    %v78 = vld [vmem:[#allocation3 + $0x60] sm:$0xff]
    %v79 = vld [vmem:[#allocation3 + $0x68] sm:$0xf]
    %v80 = vld [vmem:[#allocation3 + $0x6c] sm:$0xff]
    %v81 = vld [vmem:[#allocation3 + $0x74] sm:$0xff]
    %v82 = vld [vmem:[#allocation3 + $0x7c] sm:$0xff]
    %v83 = vld [vmem:[#allocation3 + $0x84] sm:$0xff]
    %v84 = vld [vmem:[#allocation3 + $0x8c] sm:$0xf]
    %v85 = vld [vmem:[#allocation3 + $0x90] sm:$0xff]
    %v86 = vld [vmem:[#allocation3 + $0x98] sm:$0xff]
    %v87 = vld [vmem:[#allocation3 + $0xa0] sm:$0xff]
    %v88 = vld [vmem:[#allocation3 + $0xa8] sm:$0xff]
    %v89 = vld [vmem:[#allocation3 + $0xb0] sm:$0xf]
    %v90 = vld [vmem:[#allocation3 + $0xb4] sm:$0xff]
    %v91 = vld [vmem:[#allocation3 + $0xbc] sm:$0xff]
    %v92 = vld [vmem:[#allocation3 + $0xc4] sm:$0xff]
    %v93 = vld [vmem:[#allocation3 + $0xcc] sm:$0xff]
    %v94 = vld [vmem:[#allocation3 + $0xd4] sm:$0xf]
    %v95 = vld [vmem:[#allocation3 + $0xd8] sm:$0xff]
    %v96 = vld [vmem:[#allocation3 + $0xe0] sm:$0xff]
    %v97 = vld [vmem:[#allocation3 + $0xe8] sm:$0xff]
    %v98 = vld [vmem:[#allocation3 + $0xf0] sm:$0xff]
    %v99 = vld [vmem:[#allocation3 + $0xf8] sm:$0xf]
    %v135 = vunpack.c.l.b16 %v65
    %v136 = vunpack.c.h.b16 %v65
    %v137 = vunpack.c.l.b16 %v66
    %v138 = vunpack.c.h.b16 %v66
    %v139 = vunpack.c.l.b16 %v67
    %v140 = vunpack.c.h.b16 %v67
    %v141 = vunpack.c.l.b16 %v68
    %v142 = vunpack.c.h.b16 %v68
    %v143 = vunpack.c.l.b16 %v69
    %v144 = vunpack.c.l.b16 %v70
    %v145 = vunpack.c.h.b16 %v70
    %v146 = vunpack.c.l.b16 %v71
    %v147 = vunpack.c.h.b16 %v71
    %v148 = vunpack.c.l.b16 %v72
    %v149 = vunpack.c.h.b16 %v72
    %v150 = vunpack.c.l.b16 %v73
    %v151 = vunpack.c.h.b16 %v73
    %v152 = vunpack.c.l.b16 %v74
    %v153 = vunpack.c.l.b16 %v75
    %v154 = vunpack.c.h.b16 %v75
    %v155 = vunpack.c.l.b16 %v76
    %v156 = vunpack.c.h.b16 %v76
    %v157 = vunpack.c.l.b16 %v77
    %v158 = vunpack.c.h.b16 %v77
    %v159 = vunpack.c.l.b16 %v78
    %v160 = vunpack.c.h.b16 %v78
    %v161 = vunpack.c.l.b16 %v79
    %v162 = vunpack.c.l.b16 %v80
    %v163 = vunpack.c.h.b16 %v80
    %v164 = vunpack.c.l.b16 %v81
    %v165 = vunpack.c.h.b16 %v81
    %v166 = vunpack.c.l.b16 %v82
    %v167 = vunpack.c.h.b16 %v82
    %v168 = vunpack.c.l.b16 %v83
    %v169 = vunpack.c.h.b16 %v83
    %v170 = vunpack.c.l.b16 %v84
    %v171 = vunpack.c.l.b16 %v85
    %v172 = vunpack.c.h.b16 %v85
    %v173 = vunpack.c.l.b16 %v86
    %v174 = vunpack.c.h.b16 %v86
    %v175 = vunpack.c.l.b16 %v87
    %v176 = vunpack.c.h.b16 %v87
    %v177 = vunpack.c.l.b16 %v88
    %v178 = vunpack.c.h.b16 %v88
    %v179 = vunpack.c.l.b16 %v89
    %v180 = vunpack.c.l.b16 %v90
    %v181 = vunpack.c.h.b16 %v90
    %v182 = vunpack.c.l.b16 %v91
    %v183 = vunpack.c.h.b16 %v91
    %v184 = vunpack.c.l.b16 %v92
    %v185 = vunpack.c.h.b16 %v92
    %v186 = vunpack.c.l.b16 %v93
    %v187 = vunpack.c.h.b16 %v93
    %v188 = vunpack.c.l.b16 %v94
    %v189 = vunpack.c.l.b16 %v95
    %v190 = vunpack.c.h.b16 %v95
    %v191 = vunpack.c.l.b16 %v96
    %v192 = vunpack.c.h.b16 %v96
    %v193 = vunpack.c.l.b16 %v97
    %v194 = vunpack.c.h.b16 %v97
    %v195 = vunpack.c.l.b16 %v98
    %v196 = vunpack.c.h.b16 %v98
    %v197 = vunpack.c.l.b16 %v99
    %v198 = vpack.c.b16 %v144, %v135
    %v199 = vpack.c.b16 %v145, %v136
    %v200 = vpack.c.b16 %v146, %v137
    %v201 = vpack.c.b16 %v147, %v138
    %v202 = vpack.c.b16 %v148, %v139
    %v203 = vpack.c.b16 %v149, %v140
    %v204 = vpack.c.b16 %v150, %v141
    %v205 = vpack.c.b16 %v151, %v142
    %v206 = vpack.c.b16 %v152, %v143
    %v207 = vpack.c.b16 %v162, %v153
    %v208 = vpack.c.b16 %v163, %v154
    %v209 = vpack.c.b16 %v164, %v155
    %v210 = vpack.c.b16 %v165, %v156
    %v211 = vpack.c.b16 %v166, %v157
    %v212 = vpack.c.b16 %v167, %v158
    %v213 = vpack.c.b16 %v168, %v159
    %v214 = vpack.c.b16 %v169, %v160
    %v215 = vpack.c.b16 %v170, %v161
    %v216 = vpack.c.b16 %v180, %v171
    %v217 = vpack.c.b16 %v181, %v172
    %v218 = vpack.c.b16 %v182, %v173
    %v219 = vpack.c.b16 %v183, %v174
    %v220 = vpack.c.b16 %v184, %v175
    %v221 = vpack.c.b16 %v185, %v176
    %v222 = vpack.c.b16 %v186, %v177
    %v223 = vpack.c.b16 %v187, %v178
    %v224 = vpack.c.b16 %v188, %v179
    %v225 = vpack.c.b16 %v189, %v189
    %v226 = vpack.c.b16 %v190, %v190
    %v227 = vpack.c.b16 %v191, %v191
    %v228 = vpack.c.b16 %v192, %v192
    %v229 = vpack.c.b16 %v193, %v193
    %v230 = vpack.c.b16 %v194, %v194
    %v231 = vpack.c.b16 %v195, %v195
    %v232 = vpack.c.b16 %v196, %v196
    %v233 = vpack.c.b16 %v197, %v197
    %vm261 = vcmask 457728
    %v263 = vsel %vm261, %v64, 0
    %vm265 = vcmask 1043456
    %v267 = vsel %vm265, %v225, 0
    %v270 = vsel %vm265, %v226, 0
    %v273 = vsel %vm265, %v227, 0
    %v276 = vsel %vm265, %v228, 0
    %v279 = vsel %vm265, %v229, 0
    %v282 = vsel %vm265, %v230, 0
    %v285 = vsel %vm265, %v231, 0
    %v288 = vsel %vm265, %v232, 0
    %v291 = vsel %vm265, %v233, 0
    %293 = vmatprep.subr.bf16.mxu0 %v199
    %294 = vmatpush1.bf16.msra.mxu0 %v198
    %295 = vmatprep.subr.bf16.mxu0 %v208
    %296 = vmatpush1.bf16.msra.mxu0 %v207
    %297 = vmatprep.subr.bf16.mxu0 %v217
    %298 = vmatpush1.bf16.msra.mxu0 %v216
    %299 = vmatprep.subr.bf16.mxu0 %v270
    %300 = vmatpush1.bf16.msra.mxu0 %v267
    %301 = vmatprep.subr.bf16.mxu0 0
    %302 = vmatpush1.bf16.msra.mxu0 0
    %303 = vmatprep.subr.bf16.mxu0 0
    %304 = vmatpush1.bf16.msra.mxu0 0
    %305 = vmatprep.subr.bf16.mxu0 0
    %306 = vmatpush1.bf16.msra.mxu0 0
    %307 = vmatprep.subr.bf16.mxu0 0
    %308 = vmatpush1.bf16.msra.mxu0 0
    %309 = vmatprep.subr.bf16.mxu0 0
    %310 = vmatpush1.bf16.msra.mxu0 0
    %311 = vmatprep.subr.bf16.mxu0 0
    %312 = vmatpush1.bf16.msra.mxu0 0
    %313 = vmatprep.subr.bf16.mxu0 0
    %314 = vmatpush1.bf16.msra.mxu0 0
    %315 = vmatprep.subr.bf16.mxu0 0
    %316 = vmatpush1.bf16.msra.mxu0 0
    %317 = vmatprep.subr.bf16.mxu0 0
    %318 = vmatpush1.bf16.msra.mxu0 0
    %319 = vmatprep.subr.bf16.mxu0 0
    %320 = vmatpush1.bf16.msra.mxu0 0
    %321 = vmatprep.subr.bf16.mxu0 0
    %322 = vmatpush1.bf16.msra.mxu0 0
    %323 = vmatprep.subr.bf16.mxu0 0
    %324 = vmatpush1.bf16.msra.mxu0 0
    %325 = vmatprep.mubr.bf16.mxu0 0
    %326 = vmatmul.mubr.bf16.gmra.mrb[0].mxu0 %v263
    %v327 = vpop.f32.mrb[0].mxu0
    %v328 = vadd.f32 0.0, %v327
    %v329 = vpop.f32.mrb[0].mxu0
    %v330 = vadd.f32 0.0, %v329
    %v331 = vpop.f32.mrb[0].mxu0
    %v332 = vpop.f32.mrb[0].mxu0
    %333 = vdwg.mxu0
    %334 = vmatprep.subr.bf16.mxu0 %v201
    %335 = vmatpush1.bf16.msra.mxu0 %v200
    %336 = vmatprep.subr.bf16.mxu0 %v210
    %337 = vmatpush1.bf16.msra.mxu0 %v209
    %338 = vmatprep.subr.bf16.mxu0 %v219
    %339 = vmatpush1.bf16.msra.mxu0 %v218
    %340 = vmatprep.subr.bf16.mxu0 %v276
    %341 = vmatpush1.bf16.msra.mxu0 %v273
    %342 = vmatprep.subr.bf16.mxu0 0
    %343 = vmatpush1.bf16.msra.mxu0 0
    %344 = vmatprep.subr.bf16.mxu0 0
    %345 = vmatpush1.bf16.msra.mxu0 0
    %346 = vmatprep.subr.bf16.mxu0 0
    %347 = vmatpush1.bf16.msra.mxu0 0
    %348 = vmatprep.subr.bf16.mxu0 0
    %349 = vmatpush1.bf16.msra.mxu0 0
    %350 = vmatprep.subr.bf16.mxu0 0
    %351 = vmatpush1.bf16.msra.mxu0 0
    %352 = vmatprep.subr.bf16.mxu0 0
    %353 = vmatpush1.bf16.msra.mxu0 0
    %354 = vmatprep.subr.bf16.mxu0 0
    %355 = vmatpush1.bf16.msra.mxu0 0
    %356 = vmatprep.subr.bf16.mxu0 0
    %357 = vmatpush1.bf16.msra.mxu0 0
    %358 = vmatprep.subr.bf16.mxu0 0
    %359 = vmatpush1.bf16.msra.mxu0 0
    %360 = vmatprep.subr.bf16.mxu0 0
    %361 = vmatpush1.bf16.msra.mxu0 0
    %362 = vmatprep.subr.bf16.mxu0 0
    %363 = vmatpush1.bf16.msra.mxu0 0
    %364 = vmatprep.subr.bf16.mxu0 0
    %365 = vmatpush1.bf16.msra.mxu0 0
    %366 = vmatprep.mubr.bf16.mxu0 0
    %367 = vmatmul.mubr.bf16.gmra.mrb[0].mxu0 %v263
    %v368 = vpop.f32.mrb[0].mxu0
    %v369 = vadd.f32 0.0, %v368
    %v370 = vpop.f32.mrb[0].mxu0
    %v371 = vadd.f32 0.0, %v370
    %v372 = vpop.f32.mrb[0].mxu0
    %v373 = vpop.f32.mrb[0].mxu0
    %374 = vdwg.mxu0
    %375 = vmatprep.subr.bf16.mxu0 %v203
    %376 = vmatpush1.bf16.msra.mxu0 %v202
    %377 = vmatprep.subr.bf16.mxu0 %v212
    %378 = vmatpush1.bf16.msra.mxu0 %v211
    %379 = vmatprep.subr.bf16.mxu0 %v221
    %380 = vmatpush1.bf16.msra.mxu0 %v220
    %381 = vmatprep.subr.bf16.mxu0 %v282
    %382 = vmatpush1.bf16.msra.mxu0 %v279
    %383 = vmatprep.subr.bf16.mxu0 0
    %384 = vmatpush1.bf16.msra.mxu0 0
    %385 = vmatprep.subr.bf16.mxu0 0
    %386 = vmatpush1.bf16.msra.mxu0 0
    %387 = vmatprep.subr.bf16.mxu0 0
    %388 = vmatpush1.bf16.msra.mxu0 0
    %389 = vmatprep.subr.bf16.mxu0 0
    %390 = vmatpush1.bf16.msra.mxu0 0
    %391 = vmatprep.subr.bf16.mxu0 0
    %392 = vmatpush1.bf16.msra.mxu0 0
    %393 = vmatprep.subr.bf16.mxu0 0
    %394 = vmatpush1.bf16.msra.mxu0 0
    %395 = vmatprep.subr.bf16.mxu0 0
    %396 = vmatpush1.bf16.msra.mxu0 0
    %397 = vmatprep.subr.bf16.mxu0 0
    %398 = vmatpush1.bf16.msra.mxu0 0
    %399 = vmatprep.subr.bf16.mxu0 0
    %400 = vmatpush1.bf16.msra.mxu0 0
    %401 = vmatprep.subr.bf16.mxu0 0
    %402 = vmatpush1.bf16.msra.mxu0 0
    %403 = vmatprep.subr.bf16.mxu0 0
    %404 = vmatpush1.bf16.msra.mxu0 0
    %405 = vmatprep.subr.bf16.mxu0 0
    %406 = vmatpush1.bf16.msra.mxu0 0
    %407 = vmatprep.mubr.bf16.mxu0 0
    %408 = vmatmul.mubr.bf16.gmra.mrb[0].mxu0 %v263
    %v409 = vpop.f32.mrb[0].mxu0
    %v410 = vadd.f32 0.0, %v409
    %v411 = vpop.f32.mrb[0].mxu0
    %v412 = vadd.f32 0.0, %v411
    %v413 = vpop.f32.mrb[0].mxu0
    %v414 = vpop.f32.mrb[0].mxu0
    %415 = vdwg.mxu0
    %416 = vmatprep.subr.bf16.mxu0 %v205
    %417 = vmatpush1.bf16.msra.mxu0 %v204
    %418 = vmatprep.subr.bf16.mxu0 %v214
    %419 = vmatpush1.bf16.msra.mxu0 %v213
    %420 = vmatprep.subr.bf16.mxu0 %v223
    %421 = vmatpush1.bf16.msra.mxu0 %v222
    %422 = vmatprep.subr.bf16.mxu0 %v288
    %423 = vmatpush1.bf16.msra.mxu0 %v285
    %424 = vmatprep.subr.bf16.mxu0 0
    %425 = vmatpush1.bf16.msra.mxu0 0
    %426 = vmatprep.subr.bf16.mxu0 0
    %427 = vmatpush1.bf16.msra.mxu0 0
    %428 = vmatprep.subr.bf16.mxu0 0
    %429 = vmatpush1.bf16.msra.mxu0 0
    %430 = vmatprep.subr.bf16.mxu0 0
    %431 = vmatpush1.bf16.msra.mxu0 0
    %432 = vmatprep.subr.bf16.mxu0 0
    %433 = vmatpush1.bf16.msra.mxu0 0
    %434 = vmatprep.subr.bf16.mxu0 0
    %435 = vmatpush1.bf16.msra.mxu0 0
    %436 = vmatprep.subr.bf16.mxu0 0
    %437 = vmatpush1.bf16.msra.mxu0 0
    %438 = vmatprep.subr.bf16.mxu0 0
    %439 = vmatpush1.bf16.msra.mxu0 0
    %440 = vmatprep.subr.bf16.mxu0 0
    %441 = vmatpush1.bf16.msra.mxu0 0
    %442 = vmatprep.subr.bf16.mxu0 0
    %443 = vmatpush1.bf16.msra.mxu0 0
    %444 = vmatprep.subr.bf16.mxu0 0
    %445 = vmatpush1.bf16.msra.mxu0 0
    %446 = vmatprep.subr.bf16.mxu0 0
    %447 = vmatpush1.bf16.msra.mxu0 0
    %448 = vmatprep.mubr.bf16.mxu0 0
    %449 = vmatmul.mubr.bf16.gmra.mrb[0].mxu0 %v263
    %v450 = vpop.f32.mrb[0].mxu0
    %v451 = vadd.f32 0.0, %v450
    %v452 = vpop.f32.mrb[0].mxu0
    %v453 = vadd.f32 0.0, %v452
    %v454 = vpop.f32.mrb[0].mxu0
    %v455 = vpop.f32.mrb[0].mxu0
    %456 = vdwg.mxu0
    %457 = vmatprep.subr.bf16.mxu0 0
    %458 = vmatpush1.bf16.msra.mxu0 %v206
    %459 = vmatprep.subr.bf16.mxu0 0
    %460 = vmatpush1.bf16.msra.mxu0 %v215
    %461 = vmatprep.subr.bf16.mxu0 0
    %462 = vmatpush1.bf16.msra.mxu0 %v224
    %463 = vmatprep.subr.bf16.mxu0 0
    %464 = vmatpush1.bf16.msra.mxu0 %v291
    %465 = vmatprep.subr.bf16.mxu0 0
    %466 = vmatpush1.bf16.msra.mxu0 0
    %467 = vmatprep.subr.bf16.mxu0 0
    %468 = vmatpush1.bf16.msra.mxu0 0
    %469 = vmatprep.subr.bf16.mxu0 0
    %470 = vmatpush1.bf16.msra.mxu0 0
    %471 = vmatprep.subr.bf16.mxu0 0
    %472 = vmatpush1.bf16.msra.mxu0 0
    %473 = vmatprep.subr.bf16.mxu0 0
    %474 = vmatpush1.bf16.msra.mxu0 0
    %475 = vmatprep.subr.bf16.mxu0 0
    %476 = vmatpush1.bf16.msra.mxu0 0
    %477 = vmatprep.subr.bf16.mxu0 0
    %478 = vmatpush1.bf16.msra.mxu0 0
    %479 = vmatprep.subr.bf16.mxu0 0
    %480 = vmatpush1.bf16.msra.mxu0 0
    %481 = vmatprep.subr.bf16.mxu0 0
    %482 = vmatpush1.bf16.msra.mxu0 0
    %483 = vmatprep.subr.bf16.mxu0 0
    %484 = vmatpush1.bf16.msra.mxu0 0
    %485 = vmatprep.subr.bf16.mxu0 0
    %486 = vmatpush1.bf16.msra.mxu0 0
    %487 = vmatprep.subr.bf16.mxu0 0
    %488 = vmatpush1.bf16.msra.mxu0 0
    %489 = vmatprep.mubr.bf16.mxu0 0
    %490 = vmatmul.mubr.bf16.gmra.mrb[0].mxu0 %v263
    %v491 = vpop.f32.mrb[0].mxu0
    %v492 = vadd.f32 0.0, %v491
    %v493 = vpop.f32.mrb[0].mxu0
    %v494 = vpop.f32.mrb[0].mxu0
    %v495 = vpop.f32.mrb[0].mxu0
    %496 = vdwg.mxu0
    %v497 = vld [vmem:[#allocation6] sm:$0xff]
    %v498 = vld [vmem:[#allocation6 + $0x8] sm:$0xff]
    %v499 = vld [vmem:[#allocation6 + $0x10] sm:$0x3]
    %v500 = vld [vmem:[#allocation2] sm:$0xff]
    %v501 = vld [vmem:[#allocation2 + $0x8] sm:$0x1]
    %v502 = vmul.f32 %v328, 1.442695
    %v503 = vpow.pop %v502
    %v504 = vmul.f32 %v330, 1.442695
    %v505 = vpow.pop %v504
    %v506 = vmul.f32 %v369, 1.442695
    %v507 = vpow.pop %v506
    %v508 = vmul.f32 %v371, 1.442695
    %v509 = vpow.pop %v508
    %v510 = vmul.f32 %v410, 1.442695
    %v511 = vpow.pop %v510
    %v512 = vmul.f32 %v412, 1.442695
    %v513 = vpow.pop %v512
    %v514 = vmul.f32 %v451, 1.442695
    %v515 = vpow.pop %v514
    %v516 = vmul.f32 %v453, 1.442695
    %v517 = vpow.pop %v516
    %v518 = vmul.f32 %v492, 1.442695
    %v519 = vpow.pop %v518
    %v529 = vcombine.low %v328, %v330
    %v530 = vcombine.low %v369, %v371
    %v532 = vunpack.c.l.s4 1983009808
    %v533 = vunpack.c.0.s8 %v532
    %v534 = vlaneseq
    %v535 = vshrl.u32 %v534, 7
    %v536 = vsub.s32 %v533, %v535
    %v537 = vrot.slane %v529, %v536
    %v539 = vunpack.c.l.s4 1983009808
    %v540 = vunpack.c.0.s8 %v539
    %v541 = vlaneseq
    %v542 = vshrl.u32 %v541, 7
    %v543 = vsub.s32 %v540, %v542
    %v544 = vrot.slane %v530, %v543
    %v545 = vcombine.low %v537, %v544
    %v546 = vcombine.low %v410, %v412
    %v547 = vcombine.low %v451, %v453
    %v549 = vunpack.c.l.s4 1983009808
    %v550 = vunpack.c.0.s8 %v549
    %v551 = vlaneseq
    %v552 = vshrl.u32 %v551, 7
    %v553 = vsub.s32 %v550, %v552
    %v554 = vrot.slane %v546, %v553
    %v556 = vunpack.c.l.s4 1983009808
    %v557 = vunpack.c.0.s8 %v556
    %v558 = vlaneseq
    %v559 = vshrl.u32 %v558, 7
    %v560 = vsub.s32 %v557, %v559
    %v561 = vrot.slane %v547, %v560
    %v562 = vcombine.low %v554, %v561
    %v564 = vunpack.c.l.s4 1983009808
    %v565 = vunpack.c.0.s8 %v564
    %v566 = vlaneseq
    %v567 = vshrl.u32 %v566, 7
    %v568 = vsub.s32 %v565, %v567
    %v569 = vrot.slane %v492, %v568
    %v573 = vmul.f32 %v497, %v545
    %v574 = vmul.f32 %v498, %v562
    %v575 = vmul.f32 %v499, %v569
    %v579 = vlaneseq
    %v580 = vshrl.u32 %v579, 7
    %v581 = vsub.s32 0, %v580
    %v582 = vrot.slane %v573, %v581
    %v583 = vlaneseq
    %v584 = vshrl.u32 %v583, 7
    %v585 = vsub.s32 2, %v584
    %v586 = vrot.slane %v573, %v585
    %v587 = vlaneseq
    %v588 = vshrl.u32 %v587, 7
    %v589 = vsub.s32 4, %v588
    %v590 = vrot.slane %v573, %v589
    %v591 = vlaneseq
    %v592 = vshrl.u32 %v591, 7
    %v593 = vsub.s32 6, %v592
    %v594 = vrot.slane %v573, %v593
    %v595 = vlaneseq
    %v596 = vshrl.u32 %v595, 7
    %v597 = vsub.s32 0, %v596
    %v598 = vrot.slane %v574, %v597
    %v599 = vlaneseq
    %v600 = vshrl.u32 %v599, 7
    %v601 = vsub.s32 2, %v600
    %v602 = vrot.slane %v574, %v601
    %v603 = vlaneseq
    %v604 = vshrl.u32 %v603, 7
    %v605 = vsub.s32 4, %v604
    %v606 = vrot.slane %v574, %v605
    %v607 = vlaneseq
    %v608 = vshrl.u32 %v607, 7
    %v609 = vsub.s32 6, %v608
    %v610 = vrot.slane %v574, %v609
    %v611 = vlaneseq
    %v612 = vshrl.u32 %v611, 7
    %v613 = vsub.s32 0, %v612
    %v614 = vrot.slane %v575, %v613
    %v624 = vsub.f32 %v503, %v582
    %v625 = vsub.f32 %v505, %v586
    %v626 = vsub.f32 %v507, %v590
    %v627 = vsub.f32 %v509, %v594
    %v628 = vsub.f32 %v511, %v598
    %v629 = vsub.f32 %v513, %v602
    %v630 = vsub.f32 %v515, %v606
    %v631 = vsub.f32 %v517, %v610
    %v632 = vsub.f32 %v519, %v614
    %v642 = vcombine.low %v624, %v625
    %v643 = vcombine.low %v626, %v627
    %v645 = vunpack.c.l.s4 1983009808
    %v646 = vunpack.c.0.s8 %v645
    %v647 = vlaneseq
    %v648 = vshrl.u32 %v647, 7
    %v649 = vsub.s32 %v646, %v648
    %v650 = vrot.slane %v642, %v649
    %v652 = vunpack.c.l.s4 1983009808
    %v653 = vunpack.c.0.s8 %v652
    %v654 = vlaneseq
    %v655 = vshrl.u32 %v654, 7
    %v656 = vsub.s32 %v653, %v655
    %v657 = vrot.slane %v643, %v656
    %v658 = vcombine.low %v650, %v657
    %v659 = vcombine.low %v628, %v629
    %v660 = vcombine.low %v630, %v631
    %v662 = vunpack.c.l.s4 1983009808
    %v663 = vunpack.c.0.s8 %v662
    %v664 = vlaneseq
    %v665 = vshrl.u32 %v664, 7
    %v666 = vsub.s32 %v663, %v665
    %v667 = vrot.slane %v659, %v666
    %v669 = vunpack.c.l.s4 1983009808
    %v670 = vunpack.c.0.s8 %v669
    %v671 = vlaneseq
    %v672 = vshrl.u32 %v671, 7
    %v673 = vsub.s32 %v670, %v672
    %v674 = vrot.slane %v660, %v673
    %v675 = vcombine.low %v667, %v674
    %v677 = vunpack.c.l.s4 1983009808
    %v678 = vunpack.c.0.s8 %v677
    %v679 = vlaneseq
    %v680 = vshrl.u32 %v679, 7
    %v681 = vsub.s32 %v678, %v680
    %v682 = vrot.slane %v632, %v681
    %v683 = vrot.slane %v658, 7
    %v684 = vrot.slane %v675, 7
    %v685 = vrot.slane %v682, 7
    %v689 = vmul.f32 %v497, %v683
    %v690 = vmul.f32 %v498, %v684
    %v691 = vmul.f32 %v499, %v685
    %v696 = vunpack.c.l.s4 1966171168
    %v697 = vunpack.c.0.s8 %v696
    %v698 = vlaneseq
    %v699 = vshrl.u32 %v698, 7
    %v700 = vsub.s32 %v697, %v699
    %v701 = vrot.slane %v689, %v700
    %v703 = vunpack.c.l.s4 1966171168
    %v704 = vunpack.c.0.s8 %v703
    %v705 = vlaneseq
    %v706 = vshrl.u32 %v705, 7
    %v707 = vsub.s32 %v704, %v706
    %v708 = vrot.slane %v690, %v707
    %v709 = vcombine.high %v701, %v708
    %v711 = vunpack.c.l.s4 1966171168
    %v712 = vunpack.c.0.s8 %v711
    %v713 = vlaneseq
    %v714 = vshrl.u32 %v713, 7
    %v715 = vsub.s32 %v712, %v714
    %v716 = vrot.slane %v691, %v715
    %v717 = vcombine.high %v716, %v716
    %v720 = vadd.f32 %v500, %v709
    %v721 = vadd.f32 %v501, %v717
    %722 = vst [vmem:[#allocation2] sm:$0xff] %v720
    %v723 = vlaneseq
    %vm724 = vcmp.ge.s32.totalorder %v723, 0
    %vm725 = vcmp.lt.s32.totalorder %v723, 128
    %vm726 = vmand %vm724, %vm725
    %727 = vst.msk [vmem:[#allocation2 + $0x8] sm:$0x1] %vm726, %v721
    // Predicated region
    $region26: #{_lambda_.1} parent=1 // pred_check
      %p728 = pneg %p54
    $region27: #{_lambda_.1} parent=1 // pred_check_branch
      %730 = sbr.rel (%p728) target = $region29
    $region28: #{_lambda_.1} parent=1 // pred_region
      %v731 = vld [vmem:[#allocation2] sm:$0xff]
      %v732 = vld [vmem:[#allocation2 + $0x8] sm:$0x1]
      %v735 = vlaneseq
      %v736 = vshrl.u32 %v735, 7
      %v737 = vsub.s32 0, %v736
      %v738 = vrot.slane %v731, %v737
      %v739 = vlaneseq
      %v740 = vshrl.u32 %v739, 7
      %v741 = vsub.s32 1, %v740
      %v742 = vrot.slane %v731, %v741
      %v743 = vlaneseq
      %v744 = vshrl.u32 %v743, 7
      %v745 = vsub.s32 2, %v744
      %v746 = vrot.slane %v731, %v745
      %v747 = vlaneseq
      %v748 = vshrl.u32 %v747, 7
      %v749 = vsub.s32 3, %v748
      %v750 = vrot.slane %v731, %v749
      %v751 = vlaneseq
      %v752 = vshrl.u32 %v751, 7
      %v753 = vsub.s32 4, %v752
      %v754 = vrot.slane %v731, %v753
      %v755 = vlaneseq
      %v756 = vshrl.u32 %v755, 7
      %v757 = vsub.s32 5, %v756
      %v758 = vrot.slane %v731, %v757
      %v759 = vlaneseq
      %v760 = vshrl.u32 %v759, 7
      %v761 = vsub.s32 6, %v760
      %v762 = vrot.slane %v731, %v761
      %v763 = vlaneseq
      %v764 = vshrl.u32 %v763, 7
      %v765 = vsub.s32 7, %v764
      %v766 = vrot.slane %v731, %v765
      %v767 = vlaneseq
      %v768 = vshrl.u32 %v767, 7
      %v769 = vsub.s32 0, %v768
      %v770 = vrot.slane %v732, %v769
      %vm780 = vcmask 1040384
      %v781 = vsel %vm780, %v738, 0.0
      %v782 = vsel %vm780, %v742, 0.0
      %v783 = vadd.f32 %v781, %v782
      %v784 = vsel %vm780, %v746, 0.0
      %v785 = vadd.f32 %v783, %v784
      %v786 = vsel %vm780, %v750, 0.0
      %v787 = vadd.f32 %v785, %v786
      %v788 = vsel %vm780, %v754, 0.0
      %v789 = vadd.f32 %v787, %v788
      %v790 = vsel %vm780, %v758, 0.0
      %v791 = vadd.f32 %v789, %v790
      %v792 = vsel %vm780, %v762, 0.0
      %v793 = vadd.f32 %v791, %v792
      %v794 = vsel %vm780, %v766, 0.0
      %v795 = vadd.f32 %v793, %v794
      %v796 = vsel %vm780, %v770, 0.0
      %v797 = vadd.f32 %v795, %v796
      %798 = vadd.xlane.f32.xlu0 %v797
      %v799 = vpop.xlane.xlu0 %798
      %v800 = vrot.slane %v799, 4
      %v801 = vadd.f32 %v799, %v800
      %v802 = vrot.slane %v801, 2
      %v803 = vadd.f32 %v801, %v802
      %v804 = vrot.slane %v803, 1
      %v805 = vadd.f32 %v803, %v804
      %s806 = vtos %v805
      %v807 = vstv %s806
      %vm808 = vcmask 0
      %809 = vst.msk [vmem:[#allocation8] sm:$0x1] %vm808, %v807
    $region29: #{_lambda_.1} parent=1 // pred_fallthru
      _
    // Predicated region
    $region30: #{_lambda_.1} parent=1 // pred_check
      _
    $region31: #{_lambda_.1} parent=1 // pred_check_branch
      %811 = sbr.rel (0) target = $region33
    $region32: #{_lambda_.1} parent=1 // pred_region
      %s813 = ssub.s32 16, 16
      %814 = vsyncadd [#allocation5], %s813
      %s816 = sshll.u32 [#allocation8], 4
      %s817 = int_to_ptr.vmem [resolvable:$true] %s816
      %819 = dma.vmem_to_hbm [thread:$0]  %s817, 16, %s3, [#allocation5]
    $region33: #{_lambda_.1} parent=1 // pred_fallthru
      _
    // Predicated region
    $region34: #{_lambda_.1} parent=1 // pred_check
      _
    $region35: #{_lambda_.1} parent=1 // pred_check_branch
      %821 = sbr.rel (0) target = $region37
    $region36: #{_lambda_.1} parent=1 // pred_region
      %822 = dma.done [#allocation5], 16
    $region37: #{_lambda_.1} parent=1 // pred_fallthru
      _
    %823 = vsyncpa [#allocation4], 1
    %824 = vsyncpa [#allocation7], 1
    %825 = vsyncpa [#allocation5], 1

</llo_original>
